<compile_context>
chip_gen: v7x
topology: tpu7x:2x2x1
jax: 0.10.0
libtpu: 0.0.40
codegen_flags: <defaults>
</compile_context>

<pallas_src>
import jax
import jax.numpy as jnp
from jax import lax
from jax.experimental import pallas as pl
from jax.experimental.pallas import tpu as pltpu


def _frn_kernel(x_ref, eps_ref, gamma_ref, beta_ref, tau_ref, o_ref):
    """One row-tile: rows are (n, c) pairs, columns are flattened H*W."""
    x = x_ref[...]                                          # (TR, HW) f32
    inv_hw = jnp.float32(1.0 / x.shape[1])
    nu2 = jnp.sum(x * x, axis=1, keepdims=True) * inv_hw    # one XLU reduction
    # Fold gamma into the per-row scale -> single full-tensor FMA below.
    scale = gamma_ref[...] * lax.rsqrt(nu2 + eps_ref[...])  # EUP rsqrt
    y = x * scale + beta_ref[...]
    o_ref[...] = jnp.maximum(y, tau_ref[...])               # TLU


def filter_response_norm_2d(x, gamma, beta, tau, eps, *, eps_const=1e-6,
                            activated=True):
    """FilterResponseNorm2d.forward. x is NCHW; gamma/beta/tau/eps are (C,)."""
    N, C, H, W = x.shape
    HW = H * W
    rows = N * C

    x2 = x.reshape(rows, HW).astype(jnp.float32)

    def per_row(p):
        # (C,) -> one scalar per (n, c) row, as a (rows, 1) column vector.
        return jnp.tile(jnp.asarray(p, jnp.float32).reshape(1, C),
                        (N, 1)).reshape(rows, 1)

    eps_row = per_row(jnp.abs(jnp.asarray(eps, jnp.float32)) + eps_const)
    gamma_row = per_row(gamma)
    beta_row = per_row(beta)
    if activated:
        tau_row = per_row(tau)
    else:
        tau_row = jnp.full((rows, 1), -jnp.inf, jnp.float32)

    # Row tile: multiple of 8 sublanes; keep (x + out), double-buffered,
    # comfortably under the scoped-VMEM default on all of v5e/v6e/v7x.
    budget_bytes = 8 * 1024 * 1024
    bytes_per_row = HW * 4 * 2 * 2            # x + out, each double-buffered
    tr = max(8, min(rows, budget_bytes // max(bytes_per_row, 1)))
    tr = max(8, (tr // 8) * 8)

    rows_p = pl.cdiv(rows, tr) * tr
    if rows_p != rows:
        pad = rows_p - rows
        x2 = jnp.pad(x2, ((0, pad), (0, 0)))
        eps_row = jnp.pad(eps_row, ((0, pad), (0, 0)), constant_values=1.0)
        gamma_row = jnp.pad(gamma_row, ((0, pad), (0, 0)))
        beta_row = jnp.pad(beta_row, ((0, pad), (0, 0)))
        tau_row = jnp.pad(tau_row, ((0, pad), (0, 0)))

    row_spec = pl.BlockSpec((tr, HW), lambda i: (i, 0))
    par_spec = pl.BlockSpec((tr, 1), lambda i: (i, 0))

    out = pl.pallas_call(
        _frn_kernel,
        out_shape=jax.ShapeDtypeStruct((rows_p, HW), jnp.float32),
        grid_spec=pltpu.PrefetchScalarGridSpec(
            num_scalar_prefetch=0,
            grid=(rows_p // tr,),
            in_specs=[row_spec, par_spec, par_spec, par_spec, par_spec],
            out_specs=row_spec,
        ),
        compiler_params=pltpu.CompilerParams(
            dimension_semantics=("parallel",)),
    )(x2, eps_row, gamma_row, beta_row, tau_row)

    return out[:rows].reshape(N, C, H, W).astype(x.dtype)


# ---------------- pure-JAX reference for correctness check ----------------
def _ref_frn(x, gamma, beta, tau, eps, eps_const=1e-6, activated=True):
    nu2 = jnp.mean(x * x, axis=(2, 3), keepdims=True)
    xh = x * lax.rsqrt(nu2 + (jnp.abs(eps) + eps_const)[None, :, None, None])
    y = gamma[None, :, None, None] * xh + beta[None, :, None, None]
    if activated:
        y = jnp.maximum(y, tau[None, :, None, None])
    return y


if __name__ == "__main__":
    key = jax.random.PRNGKey(0)
    kx, kg, kb, kt, ke = jax.random.split(key, 5)

    N, C, H, W = 2, 4, 16, 16
    x = jax.random.normal(kx, (N, C, H, W), dtype=jnp.float32)
    # Non-default parameter values so every term of the forward is exercised
    # (module init would be gamma=1, beta=0, tau=0, eps=1e-6).
    gamma = 1.0 + 0.1 * jax.random.normal(kg, (C,), dtype=jnp.float32)
    beta = 0.1 * jax.random.normal(kb, (C,), dtype=jnp.float32)
    tau = 0.1 * jax.random.normal(kt, (C,), dtype=jnp.float32)
    eps = 1e-6 + 1e-3 * jnp.abs(jax.random.normal(ke, (C,), dtype=jnp.float32))

    out = jax.block_until_ready(
        filter_response_norm_2d(x, gamma, beta, tau, eps, activated=True))
    ref = jax.block_until_ready(
        _ref_frn(x, gamma, beta, tau, eps, activated=True))

    assert out.shape == (N, C, H, W)
    err = float(jnp.max(jnp.abs(out - ref)))
    assert err < 1e-4, err
    print("KERNEL_OK")
</pallas_src>

<mosaic_0001>
module attributes {stable_mosaic.version = 11 : i64} {
  func.func @_frn_kernel(%arg0: i32, %arg1: memref<8x256xf32, #tpu.memory_space<vmem>>, %arg2: memref<8x1xf32, #tpu.memory_space<vmem>>, %arg3: memref<8x1xf32, #tpu.memory_space<vmem>>, %arg4: memref<8x1xf32, #tpu.memory_space<vmem>>, %arg5: memref<8x1xf32, #tpu.memory_space<vmem>>, %arg6: memref<8x256xf32, #tpu.memory_space<vmem>>) attributes {dimension_semantics = [#tpu.dimension_semantics<parallel>], iteration_bounds = array<i64: 1>, scalar_prefetch = 0 : i64, scratch_operands = 0 : i64, tpu.core_type = #tpu.core_type<tc>, window_params = [{transform_indices = @transform_0, window_bounds = array<i64: 8, 256>}, {transform_indices = @transform_1, window_bounds = array<i64: 8, 1>}, {transform_indices = @transform_2, window_bounds = array<i64: 8, 1>}, {transform_indices = @transform_3, window_bounds = array<i64: 8, 1>}, {transform_indices = @transform_4, window_bounds = array<i64: 8, 1>}, {transform_indices = @transform_5, window_bounds = array<i64: 8, 256>}]} {
    %c0 = arith.constant 0 : index
    %c0_0 = arith.constant 0 : index
    %0 = vector.load %arg1[%c0, %c0_0] : memref<8x256xf32, #tpu.memory_space<vmem>>, vector<8x256xf32>
    %1 = arith.mulf %0, %0 : vector<8x256xf32>
    %cst = arith.constant dense<0.000000e+00> : vector<8xf32>
    %2 = vector.multi_reduction <add>, %1, %cst [1] : vector<8x256xf32> to vector<8xf32>
    %3 = vector.shape_cast %2 : vector<8xf32> to vector<8x1xf32>
    %cst_1 = arith.constant 3.906250e-03 : f32
    %4 = vector.broadcast %cst_1 : f32 to vector<8x1xf32>
    %5 = arith.mulf %3, %4 : vector<8x1xf32>
    %c0_2 = arith.constant 0 : index
    %c0_3 = arith.constant 0 : index
    %6 = vector.load %arg3[%c0_2, %c0_3] : memref<8x1xf32, #tpu.memory_space<vmem>>, vector<8x1xf32>
    %c0_4 = arith.constant 0 : index
    %c0_5 = arith.constant 0 : index
    %7 = vector.load %arg2[%c0_4, %c0_5] : memref<8x1xf32, #tpu.memory_space<vmem>>, vector<8x1xf32>
    %8 = arith.addf %5, %7 : vector<8x1xf32>
    %9 = math.rsqrt %8 : vector<8x1xf32>
    %10 = arith.mulf %6, %9 : vector<8x1xf32>
    %11 = vector.broadcast %10 : vector<8x1xf32> to vector<8x256xf32>
    %12 = arith.mulf %0, %11 : vector<8x256xf32>
    %c0_6 = arith.constant 0 : index
    %c0_7 = arith.constant 0 : index
    %13 = vector.load %arg4[%c0_6, %c0_7] : memref<8x1xf32, #tpu.memory_space<vmem>>, vector<8x1xf32>
    %14 = vector.broadcast %13 : vector<8x1xf32> to vector<8x256xf32>
    %15 = arith.addf %12, %14 : vector<8x256xf32>
    %c0_8 = arith.constant 0 : index
    %c0_9 = arith.constant 0 : index
    %16 = vector.load %arg5[%c0_8, %c0_9] : memref<8x1xf32, #tpu.memory_space<vmem>>, vector<8x1xf32>
    %17 = vector.broadcast %16 : vector<8x1xf32> to vector<8x256xf32>
    %18 = arith.maximumf %15, %17 : vector<8x256xf32>
    %c0_10 = arith.constant 0 : index
    %c0_11 = arith.constant 0 : index
    %19 = vector.load %arg6[%c0_10, %c0_11] : memref<8x256xf32, #tpu.memory_space<vmem>>, vector<8x256xf32>
    tpu.vector_store %arg6[%c0_10, %c0_11], %18 {strides = array<i32>} : memref<8x256xf32, #tpu.memory_space<vmem>>, vector<8x256xf32>,
    return
  }
  func.func @transform_0(%arg0: i32) -> (i32, i32) {
    %c0_i32 = arith.constant 0 : i32
    %c0_i32_0 = arith.constant 0 : i32
    return %arg0, %c0_i32 : i32, i32
  }
  func.func @transform_1(%arg0: i32) -> (i32, i32) {
    %c0_i32 = arith.constant 0 : i32
    %c0_i32_0 = arith.constant 0 : i32
    return %arg0, %c0_i32 : i32, i32
  }
  func.func @transform_2(%arg0: i32) -> (i32, i32) {
    %c0_i32 = arith.constant 0 : i32
    %c0_i32_0 = arith.constant 0 : i32
    return %arg0, %c0_i32 : i32, i32
  }
  func.func @transform_3(%arg0: i32) -> (i32, i32) {
    %c0_i32 = arith.constant 0 : i32
    %c0_i32_0 = arith.constant 0 : i32
    return %arg0, %c0_i32 : i32, i32
  }
  func.func @transform_4(%arg0: i32) -> (i32, i32) {
    %c0_i32 = arith.constant 0 : i32
    %c0_i32_0 = arith.constant 0 : i32
    return %arg0, %c0_i32 : i32, i32
  }
  func.func @transform_5(%arg0: i32) -> (i32, i32) {
    %c0_i32 = arith.constant 0 : i32
    %c0_i32_0 = arith.constant 0 : i32
    return %arg0, %c0_i32 : i32, i32
  }
}

</mosaic_0001>

<llo_original>
// kernel: tpu_custom_call.1
$region0: #{tpu_custom_call.1}
  #allocation0 [shape = 'u32[]', space=smem, size = 0x4, offset = 0x4, fixed_abs, tag = 'smem constant byte address 0x4 - core index']
  #allocation1 [shape = 'u32[144,128]{1,0:T(1,128)}', space=vmem, size = 0x12000, scoped, tag = 'internal scratch']
  %s0 = inlined_call_operand.vmem [shape: f32[8,256], index: 0, kind: input, shape index: {}]
  %s1 = inlined_call_operand.vmem [shape: f32[8,1], index: 1, kind: input, shape index: {}]
  %s2 = inlined_call_operand.vmem [shape: f32[8,1], index: 2, kind: input, shape index: {}]
  %s3 = inlined_call_operand.vmem [shape: f32[8,1], index: 3, kind: input, shape index: {}]
  %s4 = inlined_call_operand.vmem [shape: f32[8,1], index: 4, kind: input, shape index: {}]
  %s5 = inlined_call_operand.hbm [shape: f32[8,256], index: 5, kind: output, shape index: {}]
  %s6 = sld [smem:[#allocation0]]
  $region30: #{tpu_custom_call.1} parent=0
    _
  %s8 = ssub.s32 1, %s6
  %s9 = scalar_select 0, %s8, %s6
  $region1: #{tpu_custom_call.1} parent=0
    #allocation2 [shape = 'u8[8192]{0}', space=vmem, size = 0x2000, scoped, tag = 'output window, operand 0, single buffered']
    #allocation3 [shape = 's32[1]{0}', space=sflag, size = 0x4, scoped, tag = 'scoped memory for tpu_custom_call.1']
    %10 = vsyncpa [#allocation3], 0
    // Predicated region
    $region2: #{tpu_custom_call.1} parent=1 // pred_check
      _
    $region3: #{tpu_custom_call.1} parent=1 // pred_check_branch
      %12 = sbr.rel (0) target = $region5
    $region4: #{tpu_custom_call.1} parent=1 // pred_region
      _
    $region5: #{tpu_custom_call.1} parent=1 // pred_fallthru
      _
    // Predicated region
    $region6: #{tpu_custom_call.1} parent=1 // pred_check
      _
    $region7: #{tpu_custom_call.1} parent=1 // pred_check_branch
      %14 = sbr.rel (0) target = $region9
    $region8: #{tpu_custom_call.1} parent=1 // pred_region
      _
    $region9: #{tpu_custom_call.1} parent=1 // pred_fallthru
      _
    // Predicated region
    $region10: #{tpu_custom_call.1} parent=1 // pred_check
      _
    $region11: #{tpu_custom_call.1} parent=1 // pred_check_branch
      %16 = sbr.rel (0) target = $region13
    $region12: #{tpu_custom_call.1} parent=1 // pred_region
      _
    $region13: #{tpu_custom_call.1} parent=1 // pred_fallthru
      _
    // Predicated region
    $region14: #{tpu_custom_call.1} parent=1 // pred_check
      _
    $region15: #{tpu_custom_call.1} parent=1 // pred_check_branch
      %18 = sbr.rel (0) target = $region17
    $region16: #{tpu_custom_call.1} parent=1 // pred_region
      _
    $region17: #{tpu_custom_call.1} parent=1 // pred_fallthru
      _
    // Predicated region
    $region18: #{tpu_custom_call.1} parent=1 // pred_check
      _
    $region19: #{tpu_custom_call.1} parent=1 // pred_check_branch
      %20 = sbr.rel (0) target = $region21
    $region20: #{tpu_custom_call.1} parent=1 // pred_region
      _
    $region21: #{tpu_custom_call.1} parent=1 // pred_fallthru
      _
    %v21 = vld [vmem:[%s0] sm:$0xff]
    %v22 = vld [vmem:[%s0 + $0x8] sm:$0xff]
    %v23 = vmul.f32 %v21, %v21
    %v24 = vmul.f32 %v22, %v22
    %v25 = vadd.f32 %v23, %v24
    %26 = vadd.xlane.f32.xlu0 %v25
    %v27 = vpop.xlane.xlu0 %26
    %v28 = vmul.f32 %v27, 0.00390625
    %v29 = vld [vmem:[%s2] sm:$0xff]
    %v30 = vld [vmem:[%s1] sm:$0xff]
    %v31 = vadd.f32 %v28, %v30
    %v32 = vrsqrt.pop %v31
    %v33 = vmul.f32 %v29, %v32
    %35 = vset.pattern.permute.xlu0 0
    %36 = vperm.xlu0 %35, %v33
    %v37 = vpop.permute.xlu0 %36
    %v39 = vmul.f32 %v21, %v37
    %v40 = vmul.f32 %v22, %v37
    %v41 = vld [vmem:[%s3] sm:$0xff]
    %43 = vset.pattern.permute.xlu0 0
    %44 = vperm.xlu0 %43, %v41
    %v45 = vpop.permute.xlu0 %44
    %v47 = vadd.f32 %v39, %v45
    %v48 = vadd.f32 %v40, %v45
    %v49 = vld [vmem:[%s4] sm:$0xff]
    %51 = vset.pattern.permute.xlu0 0
    %52 = vperm.xlu0 %51, %v49
    %v53 = vpop.permute.xlu0 %52
    %v55 = vmax.f32 %v47, %v53
    %v56 = vmax.f32 %v48, %v53
    %57 = vst [vmem:[#allocation2] sm:$0xff] %v55
    %58 = vst [vmem:[#allocation2 + $0x8] sm:$0xff] %v56
    // Predicated region
    $region22: #{tpu_custom_call.1} parent=1 // pred_check
      _
    $region23: #{tpu_custom_call.1} parent=1 // pred_check_branch
      %60 = sbr.rel (0) target = $region25
    $region24: #{tpu_custom_call.1} parent=1 // pred_region
      %s62 = ssub.s32 256, 256
      %63 = vsyncadd [#allocation3], %s62
      %s65 = sshll.u32 [#allocation2], 4
      %s66 = int_to_ptr.vmem [resolvable:$true] %s65
      %68 = dma.vmem_to_hbm [thread:$0]  %s66, 256, %s5, [#allocation3]
    $region25: #{tpu_custom_call.1} parent=1 // pred_fallthru
      _
    // Predicated region
    $region26: #{tpu_custom_call.1} parent=1 // pred_check
      _
    $region27: #{tpu_custom_call.1} parent=1 // pred_check_branch
      %70 = sbr.rel (0) target = $region29
    $region28: #{tpu_custom_call.1} parent=1 // pred_region
      %71 = dma.done [#allocation3], 256
    $region29: #{tpu_custom_call.1} parent=1 // pred_fallthru
      _
    %72 = vsyncpa [#allocation3], 1

</llo_original>
